<compile_context>
chip_gen: v5e
topology: v5e:2x2
jax: 0.10.0
libtpu: 0.0.40
codegen_flags: <defaults>
</compile_context>

<pallas_src>
import jax
import jax.numpy as jnp
from jax.experimental import pallas as pl
from jax.experimental.pallas import tpu as pltpu

# ---- problem sizes / hyper-parameters (deterministic, in-script) -----------
B, C, H, W = 2, 4, 16, 16          # batch, channels, spatial (NCHW like PyTorch)
D = C * H * W                      # flattened image dim = 1024
Z = 16                             # latent_dim
BP = 8                             # batch padded to the f32 sublane tile
BETA = 4.0                         # module uses `self.beta * (kl - C).abs()`
C_MAX = 25.0
C_STOP_ITER = 1.0e5
GLOBAL_ITER = 0                    # BetaVAE_B.__init__ sets global_iter = 0


def _beta_vae_b_kernel(x_ref, eps_ref, wenc_ref, benc_ref, wdec_ref, bdec_ref,
                       xrec_ref, dist_ref, recon_ref, kl_ref):
    x = x_ref[...]                                              # (BP, D) f32

    # --- fused encoder: one MXU pass -> [mu | logvar] lane-packed (BP, 2Z) ---
    dist = jnp.dot(x.astype(jnp.bfloat16), wenc_ref[...],
                   preferred_element_type=jnp.float32) + benc_ref[...]
    mu = dist[:, :Z]
    logvar = dist[:, Z:]

    # --- reparametrize_BH: z = mu + exp(logvar/2) * eps (single exp) ---------
    std = jnp.exp(0.5 * logvar)                                 # f32 on EUP
    z = mu + std * eps_ref[...]                                 # (BP, Z) f32

    # --- decoder -------------------------------------------------------------
    xrec = jnp.dot(z.astype(jnp.bfloat16), wdec_ref[...],
                   preferred_element_type=jnp.float32) + bdec_ref[...]

    xrec_ref[...] = xrec                                        # (BP, D)
    dist_ref[...] = dist                                        # (BP, 2Z)

    # --- mask padded batch rows out of the scalar reductions -----------------
    row = jax.lax.broadcasted_iota(jnp.int32, (BP, 1), 0)
    valid = (row < B).astype(jnp.float32)                       # (BP, 1)

    # --- reconstruction_loss (gaussian, reduce_mode='sum'): sum(SE)/B --------
    diff = xrec - x
    se_rows = jnp.sum(diff * diff, axis=1, keepdims=True) * valid      # (BP, 1)
    recon_ref[...] = jnp.sum(se_rows, axis=0, keepdims=True) * (1.0 / B)

    # --- kl_divergence: total_kld = klds.sum(1).mean(0) ----------------------
    klds = -0.5 * (1.0 + logvar - mu * mu - std * std)          # exp(logvar)=std^2
    kld_rows = jnp.sum(klds, axis=1, keepdims=True) * valid             # (BP, 1)
    kl_ref[...] = jnp.sum(kld_rows, axis=0, keepdims=True) * (1.0 / B)


def beta_vae_b_forward(x_nchw, eps, params, global_iter=GLOBAL_ITER):
    """Runs the fused BetaVAE_B forward pass; returns the same dict as PyTorch."""
    x_flat = x_nchw.reshape(B, D).astype(jnp.float32)
    # zero-pad the batch (sublane) axis up to 8 so all kernel loads/stores are
    # unmasked; the kernel masks the pad rows out of the scalar reductions.
    x_pad = jnp.zeros((BP, D), jnp.float32).at[:B].set(x_flat)
    eps_pad = jnp.zeros((BP, Z), jnp.float32).at[:B].set(eps.astype(jnp.float32))

    vmem = pl.BlockSpec(memory_space=pltpu.MemorySpace.VMEM)
    xrec_pad, dist_pad, recon, total_kld = pl.pallas_call(
        _beta_vae_b_kernel,
        out_shape=(
            jax.ShapeDtypeStruct((BP, D), jnp.float32),      # x_recon (flat, padded)
            jax.ShapeDtypeStruct((BP, 2 * Z), jnp.float32),  # [mu | logvar]
            jax.ShapeDtypeStruct((1, 1), jnp.float32),       # recon_loss
            jax.ShapeDtypeStruct((1, 1), jnp.float32),       # total_kld
        ),
        in_specs=[vmem] * 6,
        out_specs=(vmem,) * 4,
    )(x_pad, eps_pad,
      params["w_enc"], params["b_enc"], params["w_dec"], params["b_dec"])

    xrec = xrec_pad[:B]
    mu = dist_pad[:B, :Z]
    logvar = dist_pad[:B, Z:]
    recon_s = recon[0, 0]
    kld_s = total_kld[0, 0]

    # get_C(): clamp(C_max / C_stop_iter * global_iter, 0, C_max)  — pure-scalar
    # epilogue + final objective folded into the wrapper.
    c_val = jnp.clip(jnp.asarray(C_MAX / C_STOP_ITER * global_iter, jnp.float32),
                     0.0, C_MAX)
    loss = recon_s + BETA * jnp.abs(kld_s - c_val)

    return {
        "loss": loss.reshape(1),                 # matches total_kld's (1,) broadcast
        "-log p(x|z)": recon_s,                  # scalar recon loss
        "kl": kld_s.reshape(1),
        "decoded_imgs": xrec.reshape(B, C, H, W),
        "mu": mu,
        "logvar": logvar,
    }


def init_params(key):
    """Deterministic synthetic weights (fused encoder -> 2*Z, decoder -> D)."""
    k1, k2, k3 = jax.random.split(key, 3)
    scale = 0.02
    w_mu = scale * jax.random.normal(k1, (D, Z), jnp.float32)
    w_lv = scale * jax.random.normal(k2, (D, Z), jnp.float32)
    return {
        # bf16 weights: MXU consumes bf16 natively with f32 accumulation; halves
        # the weight HBM traffic on this HBM/latency-bound kernel.
        "w_enc": jnp.concatenate([w_mu, w_lv], axis=1).astype(jnp.bfloat16),  # (D, 2Z)
        "b_enc": jnp.zeros((1, 2 * Z), jnp.float32),
        "w_dec": (scale * jax.random.normal(k3, (Z, D), jnp.float32)).astype(jnp.bfloat16),
        "b_dec": jnp.zeros((1, D), jnp.float32),
    }


if __name__ == "__main__":
    key = jax.random.PRNGKey(0)
    k_x, k_eps, k_params = jax.random.split(key, 3)

    x = jax.random.uniform(k_x, (B, C, H, W), jnp.float32)       # NCHW, like PyTorch
    # TODO(synk): PyTorch samples eps with std.data.new(...).normal_() inside the
    # module; here eps is drawn deterministically with jax.random and passed in.
    eps = jax.random.normal(k_eps, (B, Z), jnp.float32)
    params = init_params(k_params)

    out = beta_vae_b_forward(x, eps, params)
    jax.block_until_ready(out)

    assert out["decoded_imgs"].shape == (B, C, H, W)
    assert out["loss"].shape == (1,)
    assert out["kl"].shape == (1,)
    print("KERNEL_OK")
</pallas_src>

<mosaic_0001>
module attributes {stable_mosaic.version = 11 : i64} {
  func.func @_beta_vae_b_kernel(%arg0: memref<8x1024xf32, #tpu.memory_space<vmem>>, %arg1: memref<8x16xf32, #tpu.memory_space<vmem>>, %arg2: memref<1024x32xbf16, #tpu.memory_space<vmem>>, %arg3: memref<1x32xf32, #tpu.memory_space<vmem>>, %arg4: memref<16x1024xbf16, #tpu.memory_space<vmem>>, %arg5: memref<1x1024xf32, #tpu.memory_space<vmem>>, %arg6: memref<8x1024xf32, #tpu.memory_space<vmem>>, %arg7: memref<8x32xf32, #tpu.memory_space<vmem>>, %arg8: memref<1x1xf32, #tpu.memory_space<vmem>>, %arg9: memref<1x1xf32, #tpu.memory_space<vmem>>) attributes {dimension_semantics = [], scalar_prefetch = 0 : i64, scratch_operands = 0 : i64, tpu.core_type = #tpu.core_type<tc>} {
    %c0 = arith.constant 0 : index
    %c0_0 = arith.constant 0 : index
    %0 = vector.load %arg0[%c0, %c0_0] : memref<8x1024xf32, #tpu.memory_space<vmem>>, vector<8x1024xf32>
    %1 = arith.truncf %0 : vector<8x1024xf32> to vector<8x1024xbf16>
    %c0_1 = arith.constant 0 : index
    %c0_2 = arith.constant 0 : index
    %2 = vector.load %arg2[%c0_1, %c0_2] : memref<1024x32xbf16, #tpu.memory_space<vmem>>, vector<1024x32xbf16>
    %cst = arith.constant dense<0.000000e+00> : vector<8x32xf32>
    %3 = tpu.matmul %1, %2, %cst {dimension_numbers = #tpu.dot_dimension_numbers<[1], [0], [0], [1], [0, 0, 1, 1], [], []>} : vector<8x1024xbf16>, vector<1024x32xbf16>, vector<8x32xf32> -> vector<8x32xf32>
    %c0_3 = arith.constant 0 : index
    %c0_4 = arith.constant 0 : index
    %4 = vector.load %arg3[%c0_3, %c0_4] : memref<1x32xf32, #tpu.memory_space<vmem>>, vector<1x32xf32>
    %5 = vector.broadcast %4 : vector<1x32xf32> to vector<8x32xf32>
    %6 = arith.addf %3, %5 : vector<8x32xf32>
    %7 = vector.extract_strided_slice %6 {offsets = [0, 0], sizes = [8, 16], strides = [1, 1]} : vector<8x32xf32> to vector<8x16xf32>
    %8 = vector.extract_strided_slice %6 {offsets = [0, 16], sizes = [8, 16], strides = [1, 1]} : vector<8x32xf32> to vector<8x16xf32>
    %cst_5 = arith.constant 5.000000e-01 : f32
    %9 = vector.broadcast %cst_5 : f32 to vector<8x16xf32>
    %10 = arith.mulf %9, %8 : vector<8x16xf32>
    %11 = math.exp %10 : vector<8x16xf32>
    %c0_6 = arith.constant 0 : index
    %c0_7 = arith.constant 0 : index
    %12 = vector.load %arg1[%c0_6, %c0_7] : memref<8x16xf32, #tpu.memory_space<vmem>>, vector<8x16xf32>
    %13 = arith.mulf %11, %12 : vector<8x16xf32>
    %14 = arith.addf %7, %13 : vector<8x16xf32>
    %15 = arith.truncf %14 : vector<8x16xf32> to vector<8x16xbf16>
    %c0_8 = arith.constant 0 : index
    %c0_9 = arith.constant 0 : index
    %16 = vector.load %arg4[%c0_8, %c0_9] : memref<16x1024xbf16, #tpu.memory_space<vmem>>, vector<16x1024xbf16>
    %cst_10 = arith.constant dense<0.000000e+00> : vector<8x1024xf32>
    %17 = tpu.matmul %15, %16, %cst_10 {dimension_numbers = #tpu.dot_dimension_numbers<[1], [0], [0], [1], [0, 0, 1, 1], [], []>} : vector<8x16xbf16>, vector<16x1024xbf16>, vector<8x1024xf32> -> vector<8x1024xf32>
    %c0_11 = arith.constant 0 : index
    %c0_12 = arith.constant 0 : index
    %18 = vector.load %arg5[%c0_11, %c0_12] : memref<1x1024xf32, #tpu.memory_space<vmem>>, vector<1x1024xf32>
    %19 = vector.broadcast %18 : vector<1x1024xf32> to vector<8x1024xf32>
    %20 = arith.addf %17, %19 : vector<8x1024xf32>
    %c0_13 = arith.constant 0 : index
    %c0_14 = arith.constant 0 : index
    %21 = vector.load %arg6[%c0_13, %c0_14] : memref<8x1024xf32, #tpu.memory_space<vmem>>, vector<8x1024xf32>
    tpu.vector_store %arg6[%c0_13, %c0_14], %20 {strides = array<i32>} : memref<8x1024xf32, #tpu.memory_space<vmem>>, vector<8x1024xf32>,
    %c0_15 = arith.constant 0 : index
    %c0_16 = arith.constant 0 : index
    %22 = vector.load %arg7[%c0_15, %c0_16] : memref<8x32xf32, #tpu.memory_space<vmem>>, vector<8x32xf32>
    tpu.vector_store %arg7[%c0_15, %c0_16], %6 {strides = array<i32>} : memref<8x32xf32, #tpu.memory_space<vmem>>, vector<8x32xf32>,
    %23 = tpu.iota {dimensions = array<i32: 0>} : vector<8x1xi32>
    %c2_i32 = arith.constant 2 : i32
    %24 = vector.broadcast %c2_i32 : i32 to vector<8x1xi32>
    %25 = arith.cmpi slt, %23, %24 : vector<8x1xi32>
    %26 = arith.extui %25 : vector<8x1xi1> to vector<8x1xi32>
    %27 = arith.sitofp %26 : vector<8x1xi32> to vector<8x1xf32>
    %28 = arith.subf %20, %0 : vector<8x1024xf32>
    %29 = arith.mulf %28, %28 : vector<8x1024xf32>
    %cst_17 = arith.constant dense<0.000000e+00> : vector<8xf32>
    %30 = vector.multi_reduction <add>, %29, %cst_17 [1] : vector<8x1024xf32> to vector<8xf32>
    %31 = vector.shape_cast %30 : vector<8xf32> to vector<8x1xf32>
    %32 = arith.mulf %31, %27 : vector<8x1xf32>
    %cst_18 = arith.constant dense<0.000000e+00> : vector<1xf32>
    %33 = vector.multi_reduction <add>, %32, %cst_18 [0] : vector<8x1xf32> to vector<1xf32>
    %34 = vector.shape_cast %33 : vector<1xf32> to vector<1x1xf32>
    %cst_19 = arith.constant 5.000000e-01 : f32
    %35 = vector.broadcast %cst_19 : f32 to vector<1x1xf32>
    %36 = arith.mulf %34, %35 : vector<1x1xf32>
    %c0_20 = arith.constant 0 : index
    %c0_21 = arith.constant 0 : index
    %37 = vector.load %arg8[%c0_20, %c0_21] : memref<1x1xf32, #tpu.memory_space<vmem>>, vector<1x1xf32>
    tpu.vector_store %arg8[%c0_20, %c0_21], %36 {strides = array<i32>} : memref<1x1xf32, #tpu.memory_space<vmem>>, vector<1x1xf32>,
    %cst_22 = arith.constant 1.000000e+00 : f32
    %38 = vector.broadcast %cst_22 : f32 to vector<8x16xf32>
    %39 = arith.addf %38, %8 : vector<8x16xf32>
    %40 = arith.mulf %7, %7 : vector<8x16xf32>
    %41 = arith.subf %39, %40 : vector<8x16xf32>
    %42 = arith.mulf %11, %11 : vector<8x16xf32>
    %43 = arith.subf %41, %42 : vector<8x16xf32>
    %cst_23 = arith.constant -5.000000e-01 : f32
    %44 = vector.broadcast %cst_23 : f32 to vector<8x16xf32>
    %45 = arith.mulf %44, %43 : vector<8x16xf32>
    %cst_24 = arith.constant dense<0.000000e+00> : vector<8xf32>
    %46 = vector.multi_reduction <add>, %45, %cst_24 [1] : vector<8x16xf32> to vector<8xf32>
    %47 = vector.shape_cast %46 : vector<8xf32> to vector<8x1xf32>
    %48 = arith.mulf %47, %27 : vector<8x1xf32>
    %cst_25 = arith.constant dense<0.000000e+00> : vector<1xf32>
    %49 = vector.multi_reduction <add>, %48, %cst_25 [0] : vector<8x1xf32> to vector<1xf32>
    %50 = vector.shape_cast %49 : vector<1xf32> to vector<1x1xf32>
    %cst_26 = arith.constant 5.000000e-01 : f32
    %51 = vector.broadcast %cst_26 : f32 to vector<1x1xf32>
    %52 = arith.mulf %50, %51 : vector<1x1xf32>
    %c0_27 = arith.constant 0 : index
    %c0_28 = arith.constant 0 : index
    %53 = vector.load %arg9[%c0_27, %c0_28] : memref<1x1xf32, #tpu.memory_space<vmem>>, vector<1x1xf32>
    tpu.vector_store %arg9[%c0_27, %c0_28], %52 {strides = array<i32>} : memref<1x1xf32, #tpu.memory_space<vmem>>, vector<1x1xf32>,
    return
  }
}

</mosaic_0001>

<llo_original>
// kernel: tpu_custom_call.1
$region0: #{tpu_custom_call.1}
  #allocation0 [shape = 'u32[]', space=smem, size = 0x4, offset = 0x4, fixed_abs, tag = 'smem constant byte address 0x4 - core index']
  #allocation1 [shape = 'u32[72,128]{1,0:T(1,128)}', space=vmem, size = 0x9000, scoped, tag = 'internal scratch']
  %s0 = inlined_call_operand.vmem [shape: f32[8,1024], index: 0, kind: input, shape index: {}]
  %s1 = inlined_call_operand.vmem [shape: f32[8,16], index: 1, kind: input, shape index: {}]
  %s2 = inlined_call_operand.vmem [shape: bf16[1024,32], index: 2, kind: input, shape index: {}]
  %s3 = inlined_call_operand.vmem [shape: f32[1,32], index: 3, kind: input, shape index: {}]
  %s4 = inlined_call_operand.vmem [shape: bf16[16,1024], index: 4, kind: input, shape index: {}]
  %s5 = inlined_call_operand.vmem [shape: f32[1,1024], index: 5, kind: input, shape index: {}]
  %s6 = inlined_call_operand.hbm [shape: f32[8,1024], index: 6, kind: output, shape index: {0}]
  %s7 = inlined_call_operand.hbm [shape: f32[8,32], index: 7, kind: output, shape index: {1}]
  %s8 = inlined_call_operand.hbm [shape: f32[1,1], index: 8, kind: output, shape index: {2}]
  %s9 = inlined_call_operand.hbm [shape: f32[1,1], index: 9, kind: output, shape index: {3}]
  %10 = xla_tuple %s6, %s7, %s8, %s9
  %s11 = sld [smem:[#allocation0]]
  $region58: #{tpu_custom_call.1} parent=0
    _
  %s13 = ssub.s32 1, %s11
  %s14 = scalar_select 0, %s13, %s11
  $region1: #{tpu_custom_call.1} parent=0
    #allocation2 [shape = 'u8[32768]{0}', space=vmem, size = 0x8000, scoped, tag = 'output window, operand 0, single buffered']
    #allocation3 [shape = 's32[1]{0}', space=sflag, size = 0x4, scoped, tag = 'scoped memory for tpu_custom_call.1']
    #allocation4 [shape = 'u8[4096]{0}', space=vmem, size = 0x1000, scoped, tag = 'output window, operand 1, single buffered']
    #allocation5 [shape = 's32[1]{0}', space=sflag, size = 0x4, scoped, tag = 'scoped memory for tpu_custom_call.1']
    #allocation6 [shape = 'u8[512]{0}', space=vmem, size = 0x400, scoped, tag = 'output window, operand 2, single buffered']
    #allocation7 [shape = 'u8[512]{0}', space=vmem, size = 0x400, scoped, tag = 'output window, operand 3, single buffered']
    #allocation8 [shape = 's32[1]{0}', space=sflag, size = 0x4, scoped, tag = 'scoped memory for tpu_custom_call.1']
    %15 = vsyncpa [#allocation3], 0
    %16 = vsyncpa [#allocation5], 0
    %17 = vsyncpa [#allocation8], 0
    // Predicated region
    $region2: #{tpu_custom_call.1} parent=1 // pred_check
      _
    $region3: #{tpu_custom_call.1} parent=1 // pred_check_branch
      %19 = sbr.rel (0) target = $region5
    $region4: #{tpu_custom_call.1} parent=1 // pred_region
      _
    $region5: #{tpu_custom_call.1} parent=1 // pred_fallthru
      _
    // Predicated region
    $region6: #{tpu_custom_call.1} parent=1 // pred_check
      _
    $region7: #{tpu_custom_call.1} parent=1 // pred_check_branch
      %21 = sbr.rel (0) target = $region9
    $region8: #{tpu_custom_call.1} parent=1 // pred_region
      _
    $region9: #{tpu_custom_call.1} parent=1 // pred_fallthru
      _
    // Predicated region
    $region10: #{tpu_custom_call.1} parent=1 // pred_check
      _
    $region11: #{tpu_custom_call.1} parent=1 // pred_check_branch
      %23 = sbr.rel (0) target = $region13
    $region12: #{tpu_custom_call.1} parent=1 // pred_region
      _
    $region13: #{tpu_custom_call.1} parent=1 // pred_fallthru
      _
    // Predicated region
    $region14: #{tpu_custom_call.1} parent=1 // pred_check
      _
    $region15: #{tpu_custom_call.1} parent=1 // pred_check_branch
      %25 = sbr.rel (0) target = $region17
    $region16: #{tpu_custom_call.1} parent=1 // pred_region
      _
    $region17: #{tpu_custom_call.1} parent=1 // pred_fallthru
      _
    // Predicated region
    $region18: #{tpu_custom_call.1} parent=1 // pred_check
      _
    $region19: #{tpu_custom_call.1} parent=1 // pred_check_branch
      %27 = sbr.rel (0) target = $region21
    $region20: #{tpu_custom_call.1} parent=1 // pred_region
      _
    $region21: #{tpu_custom_call.1} parent=1 // pred_fallthru
      _
    // Predicated region
    $region22: #{tpu_custom_call.1} parent=1 // pred_check
      _
    $region23: #{tpu_custom_call.1} parent=1 // pred_check_branch
      %29 = sbr.rel (0) target = $region25
    $region24: #{tpu_custom_call.1} parent=1 // pred_region
      _
    $region25: #{tpu_custom_call.1} parent=1 // pred_fallthru
      _
    %v31 = vld [vmem:[%s0] sm:$0xff]
    %v32 = vld [vmem:[%s0 + $0x8] sm:$0xff]
    %v33 = vld [vmem:[%s0 + $0x10] sm:$0xff]
    %v34 = vld [vmem:[%s0 + $0x18] sm:$0xff]
    %v35 = vld [vmem:[%s0 + $0x20] sm:$0xff]
    %v36 = vld [vmem:[%s0 + $0x28] sm:$0xff]
    %v37 = vld [vmem:[%s0 + $0x30] sm:$0xff]
    %v38 = vld [vmem:[%s0 + $0x38] sm:$0xff]
    %v39 = vpack.c.bf16 %v31, %v31
    %v40 = vpack.c.bf16 %v32, %v32
    %v41 = vpack.c.bf16 %v33, %v33
    %v42 = vpack.c.bf16 %v34, %v34
    %v43 = vpack.c.bf16 %v35, %v35
    %v44 = vpack.c.bf16 %v36, %v36
    %v45 = vpack.c.bf16 %v37, %v37
    %v46 = vpack.c.bf16 %v38, %v38
    %v47 = vld [vmem:[%s2] sm:$0xf]
    %v48 = vld [vmem:[%s2 + $0x4] sm:$0xf]
    %v49 = vld [vmem:[%s2 + $0x8] sm:$0xf]
    %v50 = vld [vmem:[%s2 + $0xc] sm:$0xf]
    %v51 = vld [vmem:[%s2 + $0x10] sm:$0xf]
    %v52 = vld [vmem:[%s2 + $0x14] sm:$0xf]
    %v53 = vld [vmem:[%s2 + $0x18] sm:$0xf]
    %v54 = vld [vmem:[%s2 + $0x1c] sm:$0xf]
    %v55 = vld [vmem:[%s2 + $0x20] sm:$0xf]
    %v56 = vld [vmem:[%s2 + $0x24] sm:$0xf]
    %v57 = vld [vmem:[%s2 + $0x28] sm:$0xf]
    %v58 = vld [vmem:[%s2 + $0x2c] sm:$0xf]
    %v59 = vld [vmem:[%s2 + $0x30] sm:$0xf]
    %v60 = vld [vmem:[%s2 + $0x34] sm:$0xf]
    %v61 = vld [vmem:[%s2 + $0x38] sm:$0xf]
    %v62 = vld [vmem:[%s2 + $0x3c] sm:$0xf]
    %v63 = vld [vmem:[%s2 + $0x40] sm:$0xf]
    %v64 = vld [vmem:[%s2 + $0x44] sm:$0xf]
    %v65 = vld [vmem:[%s2 + $0x48] sm:$0xf]
    %v66 = vld [vmem:[%s2 + $0x4c] sm:$0xf]
    %v67 = vld [vmem:[%s2 + $0x50] sm:$0xf]
    %v68 = vld [vmem:[%s2 + $0x54] sm:$0xf]
    %v69 = vld [vmem:[%s2 + $0x58] sm:$0xf]
    %v70 = vld [vmem:[%s2 + $0x5c] sm:$0xf]
    %v71 = vld [vmem:[%s2 + $0x60] sm:$0xf]
    %v72 = vld [vmem:[%s2 + $0x64] sm:$0xf]
    %v73 = vld [vmem:[%s2 + $0x68] sm:$0xf]
    %v74 = vld [vmem:[%s2 + $0x6c] sm:$0xf]
    %v75 = vld [vmem:[%s2 + $0x70] sm:$0xf]
    %v76 = vld [vmem:[%s2 + $0x74] sm:$0xf]
    %v77 = vld [vmem:[%s2 + $0x78] sm:$0xf]
    %v78 = vld [vmem:[%s2 + $0x7c] sm:$0xf]
    %v79 = vld [vmem:[%s2 + $0x80] sm:$0xf]
    %v80 = vld [vmem:[%s2 + $0x84] sm:$0xf]
    %v81 = vld [vmem:[%s2 + $0x88] sm:$0xf]
    %v82 = vld [vmem:[%s2 + $0x8c] sm:$0xf]
    %v83 = vld [vmem:[%s2 + $0x90] sm:$0xf]
    %v84 = vld [vmem:[%s2 + $0x94] sm:$0xf]
    %v85 = vld [vmem:[%s2 + $0x98] sm:$0xf]
    %v86 = vld [vmem:[%s2 + $0x9c] sm:$0xf]
    %v87 = vld [vmem:[%s2 + $0xa0] sm:$0xf]
    %v88 = vld [vmem:[%s2 + $0xa4] sm:$0xf]
    %v89 = vld [vmem:[%s2 + $0xa8] sm:$0xf]
    %v90 = vld [vmem:[%s2 + $0xac] sm:$0xf]
    %v91 = vld [vmem:[%s2 + $0xb0] sm:$0xf]
    %v92 = vld [vmem:[%s2 + $0xb4] sm:$0xf]
    %v93 = vld [vmem:[%s2 + $0xb8] sm:$0xf]
    %v94 = vld [vmem:[%s2 + $0xbc] sm:$0xf]
    %v95 = vld [vmem:[%s2 + $0xc0] sm:$0xf]
    %v96 = vld [vmem:[%s2 + $0xc4] sm:$0xf]
    %v97 = vld [vmem:[%s2 + $0xc8] sm:$0xf]
    %v98 = vld [vmem:[%s2 + $0xcc] sm:$0xf]
    %v99 = vld [vmem:[%s2 + $0xd0] sm:$0xf]
    %v100 = vld [vmem:[%s2 + $0xd4] sm:$0xf]
    %v101 = vld [vmem:[%s2 + $0xd8] sm:$0xf]
    %v102 = vld [vmem:[%s2 + $0xdc] sm:$0xf]
    %v103 = vld [vmem:[%s2 + $0xe0] sm:$0xf]
    %v104 = vld [vmem:[%s2 + $0xe4] sm:$0xf]
    %v105 = vld [vmem:[%s2 + $0xe8] sm:$0xf]
    %v106 = vld [vmem:[%s2 + $0xec] sm:$0xf]
    %v107 = vld [vmem:[%s2 + $0xf0] sm:$0xf]
    %v108 = vld [vmem:[%s2 + $0xf4] sm:$0xf]
    %v109 = vld [vmem:[%s2 + $0xf8] sm:$0xf]
    %v110 = vld [vmem:[%s2 + $0xfc] sm:$0xf]
    %v111 = vld [vmem:[%s2 + $0x100] sm:$0xf]
    %v112 = vld [vmem:[%s2 + $0x104] sm:$0xf]
    %v113 = vld [vmem:[%s2 + $0x108] sm:$0xf]
    %v114 = vld [vmem:[%s2 + $0x10c] sm:$0xf]
    %v115 = vld [vmem:[%s2 + $0x110] sm:$0xf]
    %v116 = vld [vmem:[%s2 + $0x114] sm:$0xf]
    %v117 = vld [vmem:[%s2 + $0x118] sm:$0xf]
    %v118 = vld [vmem:[%s2 + $0x11c] sm:$0xf]
    %v119 = vld [vmem:[%s2 + $0x120] sm:$0xf]
    %v120 = vld [vmem:[%s2 + $0x124] sm:$0xf]
    %v121 = vld [vmem:[%s2 + $0x128] sm:$0xf]
    %v122 = vld [vmem:[%s2 + $0x12c] sm:$0xf]
    %v123 = vld [vmem:[%s2 + $0x130] sm:$0xf]
    %v124 = vld [vmem:[%s2 + $0x134] sm:$0xf]
    %v125 = vld [vmem:[%s2 + $0x138] sm:$0xf]
    %v126 = vld [vmem:[%s2 + $0x13c] sm:$0xf]
    %v127 = vld [vmem:[%s2 + $0x140] sm:$0xf]
    %v128 = vld [vmem:[%s2 + $0x144] sm:$0xf]
    %v129 = vld [vmem:[%s2 + $0x148] sm:$0xf]
    %v130 = vld [vmem:[%s2 + $0x14c] sm:$0xf]
    %v131 = vld [vmem:[%s2 + $0x150] sm:$0xf]
    %v132 = vld [vmem:[%s2 + $0x154] sm:$0xf]
    %v133 = vld [vmem:[%s2 + $0x158] sm:$0xf]
    %v134 = vld [vmem:[%s2 + $0x15c] sm:$0xf]
    %v135 = vld [vmem:[%s2 + $0x160] sm:$0xf]
    %v136 = vld [vmem:[%s2 + $0x164] sm:$0xf]
    %v137 = vld [vmem:[%s2 + $0x168] sm:$0xf]
    %v138 = vld [vmem:[%s2 + $0x16c] sm:$0xf]
    %v139 = vld [vmem:[%s2 + $0x170] sm:$0xf]
    %v140 = vld [vmem:[%s2 + $0x174] sm:$0xf]
    %v141 = vld [vmem:[%s2 + $0x178] sm:$0xf]
    %v142 = vld [vmem:[%s2 + $0x17c] sm:$0xf]
    %v143 = vld [vmem:[%s2 + $0x180] sm:$0xf]
    %v144 = vld [vmem:[%s2 + $0x184] sm:$0xf]
    %v145 = vld [vmem:[%s2 + $0x188] sm:$0xf]
    %v146 = vld [vmem:[%s2 + $0x18c] sm:$0xf]
    %v147 = vld [vmem:[%s2 + $0x190] sm:$0xf]
    %v148 = vld [vmem:[%s2 + $0x194] sm:$0xf]
    %v149 = vld [vmem:[%s2 + $0x198] sm:$0xf]
    %v150 = vld [vmem:[%s2 + $0x19c] sm:$0xf]
    %v151 = vld [vmem:[%s2 + $0x1a0] sm:$0xf]
    %v152 = vld [vmem:[%s2 + $0x1a4] sm:$0xf]
    %v153 = vld [vmem:[%s2 + $0x1a8] sm:$0xf]
    %v154 = vld [vmem:[%s2 + $0x1ac] sm:$0xf]
    %v155 = vld [vmem:[%s2 + $0x1b0] sm:$0xf]
    %v156 = vld [vmem:[%s2 + $0x1b4] sm:$0xf]
    %v157 = vld [vmem:[%s2 + $0x1b8] sm:$0xf]
    %v158 = vld [vmem:[%s2 + $0x1bc] sm:$0xf]
    %v159 = vld [vmem:[%s2 + $0x1c0] sm:$0xf]
    %v160 = vld [vmem:[%s2 + $0x1c4] sm:$0xf]
    %v161 = vld [vmem:[%s2 + $0x1c8] sm:$0xf]
    %v162 = vld [vmem:[%s2 + $0x1cc] sm:$0xf]
    %v163 = vld [vmem:[%s2 + $0x1d0] sm:$0xf]
    %v164 = vld [vmem:[%s2 + $0x1d4] sm:$0xf]
    %v165 = vld [vmem:[%s2 + $0x1d8] sm:$0xf]
    %v166 = vld [vmem:[%s2 + $0x1dc] sm:$0xf]
    %v167 = vld [vmem:[%s2 + $0x1e0] sm:$0xf]
    %v168 = vld [vmem:[%s2 + $0x1e4] sm:$0xf]
    %v169 = vld [vmem:[%s2 + $0x1e8] sm:$0xf]
    %v170 = vld [vmem:[%s2 + $0x1ec] sm:$0xf]
    %v171 = vld [vmem:[%s2 + $0x1f0] sm:$0xf]
    %v172 = vld [vmem:[%s2 + $0x1f4] sm:$0xf]
    %v173 = vld [vmem:[%s2 + $0x1f8] sm:$0xf]
    %v174 = vld [vmem:[%s2 + $0x1fc] sm:$0xf]
    %v175 = vld [vmem:[%s3] sm:$0x1]
    %v177 = vperm.slane %v175, 0
    %v307 = vunpack.c.l.b16 %v47
    %v308 = vunpack.c.l.b16 %v48
    %v309 = vunpack.c.l.b16 %v49
    %v310 = vunpack.c.l.b16 %v50
    %v311 = vunpack.c.l.b16 %v51
    %v312 = vunpack.c.l.b16 %v52
    %v313 = vunpack.c.l.b16 %v53
    %v314 = vunpack.c.l.b16 %v54
    %v315 = vunpack.c.l.b16 %v55
    %v316 = vunpack.c.l.b16 %v56
    %v317 = vunpack.c.l.b16 %v57
    %v318 = vunpack.c.l.b16 %v58
    %v319 = vunpack.c.l.b16 %v59
    %v320 = vunpack.c.l.b16 %v60
    %v321 = vunpack.c.l.b16 %v61
    %v322 = vunpack.c.l.b16 %v62
    %v323 = vunpack.c.l.b16 %v63
    %v324 = vunpack.c.l.b16 %v64
    %v325 = vunpack.c.l.b16 %v65
    %v326 = vunpack.c.l.b16 %v66
    %v327 = vunpack.c.l.b16 %v67
    %v328 = vunpack.c.l.b16 %v68
    %v329 = vunpack.c.l.b16 %v69
    %v330 = vunpack.c.l.b16 %v70
    %v331 = vunpack.c.l.b16 %v71
    %v332 = vunpack.c.l.b16 %v72
    %v333 = vunpack.c.l.b16 %v73
    %v334 = vunpack.c.l.b16 %v74
    %v335 = vunpack.c.l.b16 %v75
    %v336 = vunpack.c.l.b16 %v76
    %v337 = vunpack.c.l.b16 %v77
    %v338 = vunpack.c.l.b16 %v78
    %v339 = vunpack.c.l.b16 %v79
    %v340 = vunpack.c.l.b16 %v80
    %v341 = vunpack.c.l.b16 %v81
    %v342 = vunpack.c.l.b16 %v82
    %v343 = vunpack.c.l.b16 %v83
    %v344 = vunpack.c.l.b16 %v84
    %v345 = vunpack.c.l.b16 %v85
    %v346 = vunpack.c.l.b16 %v86
    %v347 = vunpack.c.l.b16 %v87
    %v348 = vunpack.c.l.b16 %v88
    %v349 = vunpack.c.l.b16 %v89
    %v350 = vunpack.c.l.b16 %v90
    %v351 = vunpack.c.l.b16 %v91
    %v352 = vunpack.c.l.b16 %v92
    %v353 = vunpack.c.l.b16 %v93
    %v354 = vunpack.c.l.b16 %v94
    %v355 = vunpack.c.l.b16 %v95
    %v356 = vunpack.c.l.b16 %v96
    %v357 = vunpack.c.l.b16 %v97
    %v358 = vunpack.c.l.b16 %v98
    %v359 = vunpack.c.l.b16 %v99
    %v360 = vunpack.c.l.b16 %v100
    %v361 = vunpack.c.l.b16 %v101
    %v362 = vunpack.c.l.b16 %v102
    %v363 = vunpack.c.l.b16 %v103
    %v364 = vunpack.c.l.b16 %v104
    %v365 = vunpack.c.l.b16 %v105
    %v366 = vunpack.c.l.b16 %v106
    %v367 = vunpack.c.l.b16 %v107
    %v368 = vunpack.c.l.b16 %v108
    %v369 = vunpack.c.l.b16 %v109
    %v370 = vunpack.c.l.b16 %v110
    %v371 = vunpack.c.l.b16 %v111
    %v372 = vunpack.c.l.b16 %v112
    %v373 = vunpack.c.l.b16 %v113
    %v374 = vunpack.c.l.b16 %v114
    %v375 = vunpack.c.l.b16 %v115
    %v376 = vunpack.c.l.b16 %v116
    %v377 = vunpack.c.l.b16 %v117
    %v378 = vunpack.c.l.b16 %v118
    %v379 = vunpack.c.l.b16 %v119
    %v380 = vunpack.c.l.b16 %v120
    %v381 = vunpack.c.l.b16 %v121
    %v382 = vunpack.c.l.b16 %v122
    %v383 = vunpack.c.l.b16 %v123
    %v384 = vunpack.c.l.b16 %v124
    %v385 = vunpack.c.l.b16 %v125
    %v386 = vunpack.c.l.b16 %v126
    %v387 = vunpack.c.l.b16 %v127
    %v388 = vunpack.c.l.b16 %v128
    %v389 = vunpack.c.l.b16 %v129
    %v390 = vunpack.c.l.b16 %v130
    %v391 = vunpack.c.l.b16 %v131
    %v392 = vunpack.c.l.b16 %v132
    %v393 = vunpack.c.l.b16 %v133
    %v394 = vunpack.c.l.b16 %v134
    %v395 = vunpack.c.l.b16 %v135
    %v396 = vunpack.c.l.b16 %v136
    %v397 = vunpack.c.l.b16 %v137
    %v398 = vunpack.c.l.b16 %v138
    %v399 = vunpack.c.l.b16 %v139
    %v400 = vunpack.c.l.b16 %v140
    %v401 = vunpack.c.l.b16 %v141
    %v402 = vunpack.c.l.b16 %v142
    %v403 = vunpack.c.l.b16 %v143
    %v404 = vunpack.c.l.b16 %v144
    %v405 = vunpack.c.l.b16 %v145
    %v406 = vunpack.c.l.b16 %v146
    %v407 = vunpack.c.l.b16 %v147
    %v408 = vunpack.c.l.b16 %v148
    %v409 = vunpack.c.l.b16 %v149
    %v410 = vunpack.c.l.b16 %v150
    %v411 = vunpack.c.l.b16 %v151
    %v412 = vunpack.c.l.b16 %v152
    %v413 = vunpack.c.l.b16 %v153
    %v414 = vunpack.c.l.b16 %v154
    %v415 = vunpack.c.l.b16 %v155
    %v416 = vunpack.c.l.b16 %v156
    %v417 = vunpack.c.l.b16 %v157
    %v418 = vunpack.c.l.b16 %v158
    %v419 = vunpack.c.l.b16 %v159
    %v420 = vunpack.c.l.b16 %v160
    %v421 = vunpack.c.l.b16 %v161
    %v422 = vunpack.c.l.b16 %v162
    %v423 = vunpack.c.l.b16 %v163
    %v424 = vunpack.c.l.b16 %v164
    %v425 = vunpack.c.l.b16 %v165
    %v426 = vunpack.c.l.b16 %v166
    %v427 = vunpack.c.l.b16 %v167
    %v428 = vunpack.c.l.b16 %v168
    %v429 = vunpack.c.l.b16 %v169
    %v430 = vunpack.c.l.b16 %v170
    %v431 = vunpack.c.l.b16 %v171
    %v432 = vunpack.c.l.b16 %v172
    %v433 = vunpack.c.l.b16 %v173
    %v434 = vunpack.c.l.b16 %v174
    %v435 = vpack.c.b16 %v308, %v307
    %v436 = vpack.c.b16 %v310, %v309
    %v437 = vpack.c.b16 %v312, %v311
    %v438 = vpack.c.b16 %v314, %v313
    %v439 = vpack.c.b16 %v316, %v315
    %v440 = vpack.c.b16 %v318, %v317
    %v441 = vpack.c.b16 %v320, %v319
    %v442 = vpack.c.b16 %v322, %v321
    %v443 = vpack.c.b16 %v324, %v323
    %v444 = vpack.c.b16 %v326, %v325
    %v445 = vpack.c.b16 %v328, %v327
    %v446 = vpack.c.b16 %v330, %v329
    %v447 = vpack.c.b16 %v332, %v331
    %v448 = vpack.c.b16 %v334, %v333
    %v449 = vpack.c.b16 %v336, %v335
    %v450 = vpack.c.b16 %v338, %v337
    %v451 = vpack.c.b16 %v340, %v339
    %v452 = vpack.c.b16 %v342, %v341
    %v453 = vpack.c.b16 %v344, %v343
    %v454 = vpack.c.b16 %v346, %v345
    %v455 = vpack.c.b16 %v348, %v347
    %v456 = vpack.c.b16 %v350, %v349
    %v457 = vpack.c.b16 %v352, %v351
    %v458 = vpack.c.b16 %v354, %v353
    %v459 = vpack.c.b16 %v356, %v355
    %v460 = vpack.c.b16 %v358, %v357
    %v461 = vpack.c.b16 %v360, %v359
    %v462 = vpack.c.b16 %v362, %v361
    %v463 = vpack.c.b16 %v364, %v363
    %v464 = vpack.c.b16 %v366, %v365
    %v465 = vpack.c.b16 %v368, %v367
    %v466 = vpack.c.b16 %v370, %v369
    %v467 = vpack.c.b16 %v372, %v371
    %v468 = vpack.c.b16 %v374, %v373
    %v469 = vpack.c.b16 %v376, %v375
    %v470 = vpack.c.b16 %v378, %v377
    %v471 = vpack.c.b16 %v380, %v379
    %v472 = vpack.c.b16 %v382, %v381
    %v473 = vpack.c.b16 %v384, %v383
    %v474 = vpack.c.b16 %v386, %v385
    %v475 = vpack.c.b16 %v388, %v387
    %v476 = vpack.c.b16 %v390, %v389
    %v477 = vpack.c.b16 %v392, %v391
    %v478 = vpack.c.b16 %v394, %v393
    %v479 = vpack.c.b16 %v396, %v395
    %v480 = vpack.c.b16 %v398, %v397
    %v481 = vpack.c.b16 %v400, %v399
    %v482 = vpack.c.b16 %v402, %v401
    %v483 = vpack.c.b16 %v404, %v403
    %v484 = vpack.c.b16 %v406, %v405
    %v485 = vpack.c.b16 %v408, %v407
    %v486 = vpack.c.b16 %v410, %v409
    %v487 = vpack.c.b16 %v412, %v411
    %v488 = vpack.c.b16 %v414, %v413
    %v489 = vpack.c.b16 %v416, %v415
    %v490 = vpack.c.b16 %v418, %v417
    %v491 = vpack.c.b16 %v420, %v419
    %v492 = vpack.c.b16 %v422, %v421
    %v493 = vpack.c.b16 %v424, %v423
    %v494 = vpack.c.b16 %v426, %v425
    %v495 = vpack.c.b16 %v428, %v427
    %v496 = vpack.c.b16 %v430, %v429
    %v497 = vpack.c.b16 %v432, %v431
    %v498 = vpack.c.b16 %v434, %v433
    %563 = vmatpush.bf16.msra.mxu0 %v442
    %564 = vmatpush.bf16.msra.mxu0 %v441
    %565 = vmatpush.bf16.msra.mxu0 %v440
    %566 = vmatpush.bf16.msra.mxu0 %v439
    %567 = vmatpush.bf16.msra.mxu0 %v438
    %568 = vmatpush.bf16.msra.mxu0 %v437
    %569 = vmatpush.bf16.msra.mxu0 %v436
    %570 = vmatpush.bf16.msra.mxu0 %v435
    %571 = vmatmul.bf16.gmra.mxu0 %v39
    %v572 = vpop.f32.mrf.mxu0
    %v573 = vadd.f32 %v177, %v572
    %v574 = vpop.f32.mrf.mxu0
    %575 = vdwg.mxu0
    %576 = vmatpush.bf16.msra.mxu0 %v450
    %577 = vmatpush.bf16.msra.mxu0 %v449
    %578 = vmatpush.bf16.msra.mxu0 %v448
    %579 = vmatpush.bf16.msra.mxu0 %v447
    %580 = vmatpush.bf16.msra.mxu0 %v446
    %581 = vmatpush.bf16.msra.mxu0 %v445
    %582 = vmatpush.bf16.msra.mxu0 %v444
    %583 = vmatpush.bf16.msra.mxu0 %v443
    %584 = vmatmul.bf16.gmra.mxu0 %v40
    %v585 = vpop.f32.mrf.mxu0
    %v586 = vadd.f32 %v573, %v585
    %v587 = vpop.f32.mrf.mxu0
    %588 = vdwg.mxu0
    %589 = vmatpush.bf16.msra.mxu0 %v458
    %590 = vmatpush.bf16.msra.mxu0 %v457
    %591 = vmatpush.bf16.msra.mxu0 %v456
    %592 = vmatpush.bf16.msra.mxu0 %v455
    %593 = vmatpush.bf16.msra.mxu0 %v454
    %594 = vmatpush.bf16.msra.mxu0 %v453
    %595 = vmatpush.bf16.msra.mxu0 %v452
    %596 = vmatpush.bf16.msra.mxu0 %v451
    %597 = vmatmul.bf16.gmra.mxu0 %v41
    %v598 = vpop.f32.mrf.mxu0
    %v599 = vadd.f32 %v586, %v598
    %v600 = vpop.f32.mrf.mxu0
    %601 = vdwg.mxu0
    %602 = vmatpush.bf16.msra.mxu0 %v466
    %603 = vmatpush.bf16.msra.mxu0 %v465
    %604 = vmatpush.bf16.msra.mxu0 %v464
    %605 = vmatpush.bf16.msra.mxu0 %v463
    %606 = vmatpush.bf16.msra.mxu0 %v462
    %607 = vmatpush.bf16.msra.mxu0 %v461
    %608 = vmatpush.bf16.msra.mxu0 %v460
    %609 = vmatpush.bf16.msra.mxu0 %v459
    %610 = vmatmul.bf16.gmra.mxu0 %v42
    %v611 = vpop.f32.mrf.mxu0
    %v612 = vadd.f32 %v599, %v611
    %v613 = vpop.f32.mrf.mxu0
    %614 = vdwg.mxu0
    %615 = vmatpush.bf16.msra.mxu0 %v474
    %616 = vmatpush.bf16.msra.mxu0 %v473
    %617 = vmatpush.bf16.msra.mxu0 %v472
    %618 = vmatpush.bf16.msra.mxu0 %v471
    %619 = vmatpush.bf16.msra.mxu0 %v470
    %620 = vmatpush.bf16.msra.mxu0 %v469
    %621 = vmatpush.bf16.msra.mxu0 %v468
    %622 = vmatpush.bf16.msra.mxu0 %v467
    %623 = vmatmul.bf16.gmra.mxu0 %v43
    %v624 = vpop.f32.mrf.mxu0
    %v625 = vadd.f32 %v612, %v624
    %v626 = vpop.f32.mrf.mxu0
    %627 = vdwg.mxu0
    %628 = vmatpush.bf16.msra.mxu0 %v482
    %629 = vmatpush.bf16.msra.mxu0 %v481
    %630 = vmatpush.bf16.msra.mxu0 %v480
    %631 = vmatpush.bf16.msra.mxu0 %v479
    %632 = vmatpush.bf16.msra.mxu0 %v478
    %633 = vmatpush.bf16.msra.mxu0 %v477
    %634 = vmatpush.bf16.msra.mxu0 %v476
    %635 = vmatpush.bf16.msra.mxu0 %v475
    %636 = vmatmul.bf16.gmra.mxu0 %v44
    %v637 = vpop.f32.mrf.mxu0
    %v638 = vadd.f32 %v625, %v637
    %v639 = vpop.f32.mrf.mxu0
    %640 = vdwg.mxu0
    %641 = vmatpush.bf16.msra.mxu0 %v490
    %642 = vmatpush.bf16.msra.mxu0 %v489
    %643 = vmatpush.bf16.msra.mxu0 %v488
    %644 = vmatpush.bf16.msra.mxu0 %v487
    %645 = vmatpush.bf16.msra.mxu0 %v486
    %646 = vmatpush.bf16.msra.mxu0 %v485
    %647 = vmatpush.bf16.msra.mxu0 %v484
    %648 = vmatpush.bf16.msra.mxu0 %v483
    %649 = vmatmul.bf16.gmra.mxu0 %v45
    %v650 = vpop.f32.mrf.mxu0
    %v651 = vadd.f32 %v638, %v650
    %v652 = vpop.f32.mrf.mxu0
    %653 = vdwg.mxu0
    %654 = vmatpush.bf16.msra.mxu0 %v498
    %655 = vmatpush.bf16.msra.mxu0 %v497
    %656 = vmatpush.bf16.msra.mxu0 %v496
    %657 = vmatpush.bf16.msra.mxu0 %v495
    %658 = vmatpush.bf16.msra.mxu0 %v494
    %659 = vmatpush.bf16.msra.mxu0 %v493
    %660 = vmatpush.bf16.msra.mxu0 %v492
    %661 = vmatpush.bf16.msra.mxu0 %v491
    %662 = vmatmul.bf16.gmra.mxu0 %v46
    %v663 = vpop.f32.mrf.mxu0
    %v664 = vadd.f32 %v651, %v663
    %v665 = vpop.f32.mrf.mxu0
    %666 = vdwg.mxu0
    %v667 = vmul.f32 %v664, 0.5
    %v668 = vmul.f32 %v667, 1.442695
    %v669 = vpow.pop %v668
    %v670 = vld [vmem:[%s1] sm:$0xff]
    %672 = vrot.lane.b32.xlu0 %v670, 16
    %v673 = vpop.permute.xlu0 %672
    %v675 = vmul.f32 %v669, %v673
    %677 = vrot.lane.b32.xlu0 %v675, 112
    %v678 = vpop.permute.xlu0 %677
    %v680 = vadd.f32 %v664, %v678
    %v681 = vpack.c.bf16 %v680, %v680
    %v682 = vld [vmem:[%s4] sm:$0xff]
    %v683 = vld [vmem:[%s4 + $0x8] sm:$0xff]
    %v684 = vld [vmem:[%s4 + $0x10] sm:$0xff]
    %v685 = vld [vmem:[%s4 + $0x18] sm:$0xff]
    %v686 = vld [vmem:[%s4 + $0x20] sm:$0xff]
    %v687 = vld [vmem:[%s4 + $0x28] sm:$0xff]
    %v688 = vld [vmem:[%s4 + $0x30] sm:$0xff]
    %v689 = vld [vmem:[%s4 + $0x38] sm:$0xff]
    %v690 = vld [vmem:[%s5] sm:$0xff]
    %v692 = vperm.slane %v690, 0
    %v693 = vperm.slane %v690, 1
    %v694 = vperm.slane %v690, 2
    %v695 = vperm.slane %v690, 3
    %v696 = vperm.slane %v690, 4
    %v697 = vperm.slane %v690, 5
    %v698 = vperm.slane %v690, 6
    %v699 = vperm.slane %v690, 7
    %v716 = vunpack.c.l.b16 %v682
    %v717 = vunpack.c.h.b16 %v682
    %v718 = vunpack.c.l.b16 %v683
    %v719 = vunpack.c.h.b16 %v683
    %v720 = vunpack.c.l.b16 %v684
    %v721 = vunpack.c.h.b16 %v684
    %v722 = vunpack.c.l.b16 %v685
    %v723 = vunpack.c.h.b16 %v685
    %v724 = vunpack.c.l.b16 %v686
    %v725 = vunpack.c.h.b16 %v686
    %v726 = vunpack.c.l.b16 %v687
    %v727 = vunpack.c.h.b16 %v687
    %v728 = vunpack.c.l.b16 %v688
    %v729 = vunpack.c.h.b16 %v688
    %v730 = vunpack.c.l.b16 %v689
    %v731 = vunpack.c.h.b16 %v689
    %v732 = vpack.c.b16 %v724, %v716
    %v733 = vpack.c.b16 %v725, %v717
    %v734 = vpack.c.b16 %v726, %v718
    %v735 = vpack.c.b16 %v727, %v719
    %v736 = vpack.c.b16 %v728, %v720
    %v737 = vpack.c.b16 %v729, %v721
    %v738 = vpack.c.b16 %v730, %v722
    %v739 = vpack.c.b16 %v731, %v723
    %vm748 = vcmask 130048
    %v750 = vsel %vm748, %v681, 0
    %752 = vmatpush.bf16.msra.mxu0 0
    %753 = vmatpush.bf16.msra.mxu0 0
    %754 = vmatpush.bf16.msra.mxu0 0
    %755 = vmatpush.bf16.msra.mxu0 0
    %756 = vmatpush.bf16.msra.mxu0 0
    %757 = vmatpush.bf16.msra.mxu0 0
    %758 = vmatpush.bf16.msra.mxu0 0
    %759 = vmatpush.bf16.msra.mxu0 %v732
    %760 = vmatmul.bf16.gmra.mxu0 %v750
    %v761 = vpop.f32.mrf.mxu0
    %v762 = vadd.f32 %v692, %v761
    %v763 = vpop.f32.mrf.mxu0
    %764 = vdwg.mxu0
    %765 = vmatpush.bf16.msra.mxu0 0
    %766 = vmatpush.bf16.msra.mxu0 0
    %767 = vmatpush.bf16.msra.mxu0 0
    %768 = vmatpush.bf16.msra.mxu0 0
    %769 = vmatpush.bf16.msra.mxu0 0
    %770 = vmatpush.bf16.msra.mxu0 0
    %771 = vmatpush.bf16.msra.mxu0 0
    %772 = vmatpush.bf16.msra.mxu0 %v733
    %773 = vmatmul.bf16.gmra.mxu0 %v750
    %v774 = vpop.f32.mrf.mxu0
    %v775 = vadd.f32 %v693, %v774
    %v776 = vpop.f32.mrf.mxu0
    %777 = vdwg.mxu0
    %778 = vmatpush.bf16.msra.mxu0 0
    %779 = vmatpush.bf16.msra.mxu0 0
    %780 = vmatpush.bf16.msra.mxu0 0
    %781 = vmatpush.bf16.msra.mxu0 0
    %782 = vmatpush.bf16.msra.mxu0 0
    %783 = vmatpush.bf16.msra.mxu0 0
    %784 = vmatpush.bf16.msra.mxu0 0
    %785 = vmatpush.bf16.msra.mxu0 %v734
    %786 = vmatmul.bf16.gmra.mxu0 %v750
    %v787 = vpop.f32.mrf.mxu0
    %v788 = vadd.f32 %v694, %v787
    %v789 = vpop.f32.mrf.mxu0
    %790 = vdwg.mxu0
    %791 = vmatpush.bf16.msra.mxu0 0
    %792 = vmatpush.bf16.msra.mxu0 0
    %793 = vmatpush.bf16.msra.mxu0 0
    %794 = vmatpush.bf16.msra.mxu0 0
    %795 = vmatpush.bf16.msra.mxu0 0
    %796 = vmatpush.bf16.msra.mxu0 0
    %797 = vmatpush.bf16.msra.mxu0 0
    %798 = vmatpush.bf16.msra.mxu0 %v735
    %799 = vmatmul.bf16.gmra.mxu0 %v750
    %v800 = vpop.f32.mrf.mxu0
    %v801 = vadd.f32 %v695, %v800
    %v802 = vpop.f32.mrf.mxu0
    %803 = vdwg.mxu0
    %804 = vmatpush.bf16.msra.mxu0 0
    %805 = vmatpush.bf16.msra.mxu0 0
    %806 = vmatpush.bf16.msra.mxu0 0
    %807 = vmatpush.bf16.msra.mxu0 0
    %808 = vmatpush.bf16.msra.mxu0 0
    %809 = vmatpush.bf16.msra.mxu0 0
    %810 = vmatpush.bf16.msra.mxu0 0
    %811 = vmatpush.bf16.msra.mxu0 %v736
    %812 = vmatmul.bf16.gmra.mxu0 %v750
    %v813 = vpop.f32.mrf.mxu0
    %v814 = vadd.f32 %v696, %v813
    %v815 = vpop.f32.mrf.mxu0
    %816 = vdwg.mxu0
    %817 = vmatpush.bf16.msra.mxu0 0
    %818 = vmatpush.bf16.msra.mxu0 0
    %819 = vmatpush.bf16.msra.mxu0 0
    %820 = vmatpush.bf16.msra.mxu0 0
    %821 = vmatpush.bf16.msra.mxu0 0
    %822 = vmatpush.bf16.msra.mxu0 0
    %823 = vmatpush.bf16.msra.mxu0 0
    %824 = vmatpush.bf16.msra.mxu0 %v737
    %825 = vmatmul.bf16.gmra.mxu0 %v750
    %v826 = vpop.f32.mrf.mxu0
    %v827 = vadd.f32 %v697, %v826
    %v828 = vpop.f32.mrf.mxu0
    %829 = vdwg.mxu0
    %830 = vmatpush.bf16.msra.mxu0 0
    %831 = vmatpush.bf16.msra.mxu0 0
    %832 = vmatpush.bf16.msra.mxu0 0
    %833 = vmatpush.bf16.msra.mxu0 0
    %834 = vmatpush.bf16.msra.mxu0 0
    %835 = vmatpush.bf16.msra.mxu0 0
    %836 = vmatpush.bf16.msra.mxu0 0
    %837 = vmatpush.bf16.msra.mxu0 %v738
    %838 = vmatmul.bf16.gmra.mxu0 %v750
    %v839 = vpop.f32.mrf.mxu0
    %v840 = vadd.f32 %v698, %v839
    %v841 = vpop.f32.mrf.mxu0
    %842 = vdwg.mxu0
    %843 = vmatpush.bf16.msra.mxu0 0
    %844 = vmatpush.bf16.msra.mxu0 0
    %845 = vmatpush.bf16.msra.mxu0 0
    %846 = vmatpush.bf16.msra.mxu0 0
    %847 = vmatpush.bf16.msra.mxu0 0
    %848 = vmatpush.bf16.msra.mxu0 0
    %849 = vmatpush.bf16.msra.mxu0 0
    %850 = vmatpush.bf16.msra.mxu0 %v739
    %851 = vmatmul.bf16.gmra.mxu0 %v750
    %v852 = vpop.f32.mrf.mxu0
    %v853 = vadd.f32 %v699, %v852
    %v854 = vpop.f32.mrf.mxu0
    %855 = vdwg.mxu0
    %856 = vst [vmem:[#allocation2] sm:$0xff] %v762
    %857 = vst [vmem:[#allocation2 + $0x8] sm:$0xff] %v775
    %858 = vst [vmem:[#allocation2 + $0x10] sm:$0xff] %v788
    %859 = vst [vmem:[#allocation2 + $0x18] sm:$0xff] %v801
    %860 = vst [vmem:[#allocation2 + $0x20] sm:$0xff] %v814
    %861 = vst [vmem:[#allocation2 + $0x28] sm:$0xff] %v827
    %862 = vst [vmem:[#allocation2 + $0x30] sm:$0xff] %v840
    %863 = vst [vmem:[#allocation2 + $0x38] sm:$0xff] %v853
    %vm864 = vcmask 261120
    %865 = vst.msk [vmem:[#allocation4] sm:$0xff] %vm864, %v664
    %v866 = vlaneseq
    %v867 = vshrl.u32 %v866, 7
    %vm868 = vcmp.lt.s32.totalorder %v867, 2
    %v869 = vsel %vm868, 1, 0
    %v870 = vcvt.s32.f32 %v869
    %v871 = vsub.f32 %v762, %v31
    %v872 = vsub.f32 %v775, %v32
    %v873 = vsub.f32 %v788, %v33
    %v874 = vsub.f32 %v801, %v34
    %v875 = vsub.f32 %v814, %v35
    %v876 = vsub.f32 %v827, %v36
    %v877 = vsub.f32 %v840, %v37
    %v878 = vsub.f32 %v853, %v38
    %v879 = vmul.f32 %v871, %v871
    %v880 = vmul.f32 %v872, %v872
    %v881 = vmul.f32 %v873, %v873
    %v882 = vmul.f32 %v874, %v874
    %v883 = vmul.f32 %v875, %v875
    %v884 = vmul.f32 %v876, %v876
    %v885 = vmul.f32 %v877, %v877
    %v886 = vmul.f32 %v878, %v878
    %v887 = vadd.f32 %v879, %v880
    %v888 = vadd.f32 %v887, %v881
    %v889 = vadd.f32 %v888, %v882
    %v890 = vadd.f32 %v889, %v883
    %v891 = vadd.f32 %v890, %v884
    %v892 = vadd.f32 %v891, %v885
    %v893 = vadd.f32 %v892, %v886
    %894 = vadd.xlane.f32.xlu0 %v893
    %v895 = vpop.xlane.xlu0 %894
    %v896 = vmul.f32 %v895, %v870
    %v897 = vrot.slane %v896, 4
    %v898 = vadd.f32 %v896, %v897
    %v899 = vrot.slane %v898, 2
    %v900 = vadd.f32 %v898, %v899
    %v901 = vrot.slane %v900, 1
    %v902 = vadd.f32 %v900, %v901
    %v903 = vmul.f32 %v902, 0.5
    %vm904 = vcmask 0
    %905 = vst.msk [vmem:[#allocation6] sm:$0x1] %vm904, %v903
    %v906 = vadd.f32 %v664, 1.0
    %v907 = vmul.f32 %v664, %v664
    %909 = vrot.lane.b32.xlu0 %v907, 16
    %v910 = vpop.permute.xlu0 %909
    %v912 = vsub.f32 %v906, %v910
    %v913 = vmul.f32 %v669, %v669
    %v914 = vsub.f32 %v912, %v913
    %v915 = vmul.f32 %v914, -0.5
    %917 = vrot.lane.b32.xlu0 %v915, 112
    %v918 = vpop.permute.xlu0 %917
    %v920 = vsel %vm748, %v918, 0.0
    %921 = vadd.xlane.f32.xlu0 %v920
    %v922 = vpop.xlane.xlu0 %921
    %v923 = vmul.f32 %v922, %v870
    %v924 = vrot.slane %v923, 4
    %v925 = vadd.f32 %v923, %v924
    %v926 = vrot.slane %v925, 2
    %v927 = vadd.f32 %v925, %v926
    %v928 = vrot.slane %v927, 1
    %v929 = vadd.f32 %v927, %v928
    %v930 = vmul.f32 %v929, 0.5
    %931 = vst.msk [vmem:[#allocation7] sm:$0x1] %vm904, %v930
    // Predicated region
    $region26: #{tpu_custom_call.1} parent=1 // pred_check
      _
    $region27: #{tpu_custom_call.1} parent=1 // pred_check_branch
      %933 = sbr.rel (0) target = $region29
    $region28: #{tpu_custom_call.1} parent=1 // pred_region
      %935 = vsyncadd [#allocation3], 0
      %s937 = sshll.u32 [#allocation2], 4
      %s938 = int_to_ptr.vmem [resolvable:$true] %s937
      %s939 = sshll.u32 %s6, 4
      %s940 = int_to_ptr.hbm [resolvable:$true] %s939
      %942 = dma.vmem_to_hbm [thread:$0]  %s938, 1024, %s940, [#allocation3]
    $region29: #{tpu_custom_call.1} parent=1 // pred_fallthru
      _
    // Predicated region
    $region30: #{tpu_custom_call.1} parent=1 // pred_check
      _
    $region31: #{tpu_custom_call.1} parent=1 // pred_check_branch
      %944 = sbr.rel (0) target = $region33
    $region32: #{tpu_custom_call.1} parent=1 // pred_region
      %946 = vsyncadd [#allocation5], 0
      %s948 = sshll.u32 [#allocation4], 4
      %s949 = int_to_ptr.vmem [resolvable:$true] %s948
      %s950 = sshll.u32 %s7, 4
      %s951 = int_to_ptr.hbm [resolvable:$true] %s950
      %953 = dma.vmem_to_hbm [thread:$0]  %s949, 128, %s951, [#allocation5]
    $region33: #{tpu_custom_call.1} parent=1 // pred_fallthru
      _
    // Predicated region
    $region34: #{tpu_custom_call.1} parent=1 // pred_check
      _
    $region35: #{tpu_custom_call.1} parent=1 // pred_check_branch
      %955 = sbr.rel (0) target = $region37
    $region36: #{tpu_custom_call.1} parent=1 // pred_region
      %957 = vsyncadd [#allocation5], 0
      %s959 = sshll.u32 [#allocation6], 4
      %s960 = int_to_ptr.vmem [resolvable:$true] %s959
      %s961 = sshll.u32 %s8, 4
      %s962 = int_to_ptr.hbm [resolvable:$true] %s961
      %964 = dma.vmem_to_hbm [thread:$0]  %s960, 16, %s962, [#allocation5]
    $region37: #{tpu_custom_call.1} parent=1 // pred_fallthru
      _
    // Predicated region
    $region38: #{tpu_custom_call.1} parent=1 // pred_check
      _
    $region39: #{tpu_custom_call.1} parent=1 // pred_check_branch
      %966 = sbr.rel (0) target = $region41
    $region40: #{tpu_custom_call.1} parent=1 // pred_region
      %968 = vsyncadd [#allocation8], 0
      %s970 = sshll.u32 [#allocation7], 4
      %s971 = int_to_ptr.vmem [resolvable:$true] %s970
      %s972 = sshll.u32 %s9, 4
      %s973 = int_to_ptr.hbm [resolvable:$true] %s972
      %975 = dma.vmem_to_hbm [thread:$0]  %s971, 16, %s973, [#allocation8]
    $region41: #{tpu_custom_call.1} parent=1 // pred_fallthru
      _
    // Predicated region
    $region42: #{tpu_custom_call.1} parent=1 // pred_check
      _
    $region43: #{tpu_custom_call.1} parent=1 // pred_check_branch
      %977 = sbr.rel (0) target = $region45
    $region44: #{tpu_custom_call.1} parent=1 // pred_region
      %979 = dma.done [#allocation3], 1024
    $region45: #{tpu_custom_call.1} parent=1 // pred_fallthru
      _
    // Predicated region
    $region46: #{tpu_custom_call.1} parent=1 // pred_check
      _
    $region47: #{tpu_custom_call.1} parent=1 // pred_check_branch
      %981 = sbr.rel (0) target = $region49
    $region48: #{tpu_custom_call.1} parent=1 // pred_region
      %983 = dma.done [#allocation5], 128
    $region49: #{tpu_custom_call.1} parent=1 // pred_fallthru
      _
    // Predicated region
    $region50: #{tpu_custom_call.1} parent=1 // pred_check
      _
    $region51: #{tpu_custom_call.1} parent=1 // pred_check_branch
      %985 = sbr.rel (0) target = $region53
    $region52: #{tpu_custom_call.1} parent=1 // pred_region
      %987 = dma.done [#allocation5], 16
    $region53: #{tpu_custom_call.1} parent=1 // pred_fallthru
      _
    // Predicated region
    $region54: #{tpu_custom_call.1} parent=1 // pred_check
      _
    $region55: #{tpu_custom_call.1} parent=1 // pred_check_branch
      %989 = sbr.rel (0) target = $region57
    $region56: #{tpu_custom_call.1} parent=1 // pred_region
      %991 = dma.done [#allocation8], 16
    $region57: #{tpu_custom_call.1} parent=1 // pred_fallthru
      _
    %992 = vsyncpa [#allocation3], 1
    %993 = vsyncpa [#allocation5], 1
    %994 = vsyncpa [#allocation8], 1

</llo_original>
